<compile_context>
chip_gen: v5e
topology: v5e:2x2
jax: 0.10.0
libtpu: 0.0.40
codegen_flags: <defaults>
</compile_context>

<pallas_src>
import functools

import jax
import jax.numpy as jnp
from jax.experimental import pallas as pl
from jax.experimental.pallas import tpu as pltpu

_LANES = 128
_SUBLANES = 8


def _num_tensorcores():
    """Best-effort TensorCores-per-chip (v7x has 2; v5e/v6e have 1)."""
    try:
        info = pltpu.get_tpu_info()
        for attr in ("num_tensorcores", "tensorcore_count", "num_cores",
                     "cores_per_chip", "core_count"):
            v = getattr(info, attr, None)
            if isinstance(v, int) and 1 <= v <= 8:
                return v
    except Exception:
        pass
    try:
        if "v7" in jax.devices()[0].device_kind.lower():
            return 2
    except Exception:
        pass
    return 1


def _wmse_kernel(*refs, tile_rows, steps, valid_rows, needs_mask, has_weight):
    """Accumulates a (8,128) f32 partial sum of (o-t)^2 [* w] for one chunk."""
    if has_weight:
        o_ref, t_ref, w_ref, out_ref = refs
    else:
        o_ref, t_ref, out_ref = refs
        w_ref = None

    # Zero this chunk's resident partial-sum block on its first step.
    @pl.when(pl.program_id(1) == 0)
    def _():
        out_ref[...] = jnp.zeros_like(out_ref)

    # Upcast BEFORE the arithmetic: bf16/fp16 inputs square and weight in f32.
    # VALU has huge slack under the HBM-bound regime, so the casts are free.
    o = o_ref[...].astype(jnp.float32)
    t = t_ref[...].astype(jnp.float32)
    diff = o - t
    wsq = diff * diff
    if has_weight:
        wsq = wsq * w_ref[...].astype(jnp.float32)

    if needs_mask:
        # Invariant: the ragged last block (and any clamped duplicate block
        # when chunks*steps > num_blocks) reads rows past the logical end of
        # the slab; this jnp.where MUST zero them (including NaN/Inf garbage)
        # before accumulation. Do not remove or reorder it after the +=.
        block = pl.program_id(0) * steps + pl.program_id(1)
        row = block * tile_rows + jax.lax.broadcasted_iota(
            jnp.int32, wsq.shape, 0)
        wsq = jnp.where(row < valid_rows, wsq, 0.0)

    # Vreg-shaped partial reduction: (tile_rows,128) -> (tile_rows//8, 8, 128)
    # summed over axis 0 is pure VPU elementwise adds; no cross-lane XLU work
    # in the inner loop.
    partial = wsq.reshape(-1, _SUBLANES, _LANES).sum(axis=0)
    out_ref[...] += partial


def weighted_mse_loss(output, target, weight, *, tile_rows=8192,
                      num_chunks=None, buffer_count=None):
    """Pallas equivalent of WeightedMSELoss.forward(output, target, weight)."""
    output = jnp.asarray(output)
    target = jnp.asarray(target)
    weight = jnp.asarray(weight)

    n = output.size

    # Scalar weight: mean(loss * w) == w * mean(loss). Skip materializing /
    # reading a broadcast weight entirely (kernel reads 2N instead of 3N).
    scalar_weight = weight.size == 1
    if not scalar_weight and weight.shape != output.shape:
        # TODO(synk): per-channel weights could also avoid materialization via
        # a dedicated size-1 BlockSpec dim / SMEM prefetch instead of broadcast.
        weight = jnp.broadcast_to(weight, output.shape)
    if target.shape != output.shape:
        target = jnp.broadcast_to(target, output.shape)

    flats = [output.reshape(-1), target.astype(output.dtype).reshape(-1)]
    if not scalar_weight:
        flats.append(weight.astype(output.dtype).reshape(-1))

    # Lane padding only when n is not a multiple of 128 (rare). Padded
    # elements are zero in both output and target -> contribute nothing.
    pad_lane = (-n) % _LANES
    if pad_lane:
        flats = [jnp.pad(f, (0, pad_lane)) for f in flats]
    rows = flats[0].shape[0] // _LANES
    mats = [f.reshape(rows, _LANES) for f in flats]

    n_inputs = len(mats)
    itemsize = jnp.dtype(output.dtype).itemsize
    n_bufs = buffer_count if buffer_count is not None else 2

    # Cap total pipeline buffers at ~24 MiB so the same config fits v7x's
    # 64 MiB-per-TC VMEM as well as v5e/v6e with an explicitly raised limit.
    max_buf_bytes = 24 << 20
    rows_cap = max_buf_bytes // (n_inputs * n_bufs * _LANES * itemsize)
    rows_cap = max(_SUBLANES, (rows_cap // _SUBLANES) * _SUBLANES)
    tile_rows = min(tile_rows, rows_cap)
    # Clip to the 8-aligned row count so tiny inputs don't request oversized
    # blocks.
    tile_rows = max(_SUBLANES,
                    min(tile_rows, pl.cdiv(rows, _SUBLANES) * _SUBLANES))

    num_blocks = pl.cdiv(rows, tile_rows)

    # Chunks = TensorCore count: v7x shards the leading "parallel" axis across
    # its 2 cores; v5e/v6e use 1 chunk and avoid duplicate-block/mask overhead.
    if num_chunks is None:
        num_chunks = _num_tensorcores()
    chunks = max(1, min(num_chunks, num_blocks))
    steps = pl.cdiv(num_blocks, chunks)
    needs_mask = (chunks * steps * tile_rows) != rows
    last_block = num_blocks - 1

    if chunks * steps > num_blocks:
        # Duplicate trailing blocks are clamped in range; their contribution
        # is masked to zero inside the kernel (needs_mask is True here).
        def in_map(p, s):
            return (jnp.minimum(p * steps + s, last_block), 0)
    else:
        def in_map(p, s):
            return (p * steps + s, 0)

    spec_kwargs = {}
    if buffer_count is not None and buffer_count != 2:
        # Optional deeper pipelining (e.g. pl.Buffered(3) on v7x).
        spec_kwargs["pipeline_mode"] = pl.Buffered(buffer_count)
    in_spec = pl.BlockSpec((tile_rows, _LANES), in_map, **spec_kwargs)

    # Explicit VMEM budget: buffers + headroom, floored at the universally-safe
    # 16 MiB and capped well under v7x's 64 MiB physical VMEM.
    block_bytes = tile_rows * _LANES * itemsize
    vmem_limit = int(min(max(n_inputs * n_bufs * block_bytes + (4 << 20),
                             16 << 20), 48 << 20))

    kernel = functools.partial(
        _wmse_kernel,
        tile_rows=tile_rows,
        steps=steps,
        valid_rows=rows,
        needs_mask=needs_mask,
        has_weight=not scalar_weight,
    )

    partials = pl.pallas_call(
        kernel,
        out_shape=jax.ShapeDtypeStruct((chunks, _SUBLANES, _LANES),
                                       jnp.float32),
        grid_spec=pltpu.PrefetchScalarGridSpec(
            num_scalar_prefetch=0,
            grid=(chunks, steps),
            in_specs=[in_spec] * n_inputs,
            out_specs=pl.BlockSpec((None, _SUBLANES, _LANES),
                                   lambda p, s: (p, 0, 0)),
        ),
        compiler_params=pltpu.CompilerParams(
            dimension_semantics=("parallel", "arbitrary"),
            vmem_limit_bytes=vmem_limit,
        ),
    )(*mats)

    # Tiny final cross-lane reduce + mean scale, done once outside the loop.
    total = jnp.sum(partials)
    if scalar_weight:
        total = total * weight.reshape(()).astype(jnp.float32)
    return (total / n).astype(output.dtype)


def _reference(output, target, weight):
    loss = (output - target) ** 2
    return jnp.mean(loss * weight)


if __name__ == "__main__":
    key = jax.random.PRNGKey(0)
    k1, k2, k3 = jax.random.split(key, 3)
    shape = (2, 4, 16, 16)  # N, C, H, W
    output = jax.random.normal(k1, shape, dtype=jnp.float32)
    target = jax.random.normal(k2, shape, dtype=jnp.float32)
    weight = jax.random.uniform(k3, shape, dtype=jnp.float32)

    # Full elementwise-weight path (3-input kernel).
    result = weighted_mse_loss(output, target, weight)
    jax.block_until_ready(result)
    ref = _reference(output, target, weight)
    assert jnp.allclose(result, ref, rtol=1e-5, atol=1e-6), (result, ref)

    # Scalar-weight fast path (no broadcast materialization, 2-input kernel).
    w_scalar = jnp.float32(0.37)
    result_s = weighted_mse_loss(output, target, w_scalar)
    jax.block_until_ready(result_s)
    ref_s = _reference(output, target, w_scalar)
    assert jnp.allclose(result_s, ref_s, rtol=1e-5, atol=1e-6), (result_s, ref_s)

    print("KERNEL_OK")
</pallas_src>

<mosaic_0001>
module attributes {stable_mosaic.version = 11 : i64} {
  func.func @_wmse_kernel(%arg0: i32, %arg1: i32, %arg2: memref<16x128xf32, #tpu.memory_space<vmem>>, %arg3: memref<16x128xf32, #tpu.memory_space<vmem>>, %arg4: memref<16x128xf32, #tpu.memory_space<vmem>>, %arg5: memref<1x8x128xf32, #tpu.memory_space<vmem>>) attributes {dimension_semantics = [#tpu.dimension_semantics<parallel>, #tpu.dimension_semantics<arbitrary>], iteration_bounds = array<i64: 1, 1>, scalar_prefetch = 0 : i64, scratch_operands = 0 : i64, tpu.core_type = #tpu.core_type<tc>, window_params = [{transform_indices = @transform_0, window_bounds = array<i64: 16, 128>}, {transform_indices = @transform_1, window_bounds = array<i64: 16, 128>}, {transform_indices = @transform_2, window_bounds = array<i64: 16, 128>}, {transform_indices = @transform_3, window_bounds = array<i64: 1, 8, 128>}]} {
    %c0_i32 = arith.constant 0 : i32
    %0 = arith.cmpi eq, %arg1, %c0_i32 : i32
    %1 = arith.extui %0 : i1 to i32
    %c0_i32_0 = arith.constant 0 : i32
    %2 = arith.cmpi ne, %1, %c0_i32_0 : i32
    scf.if %2 {
      %cst_12 = arith.constant 0.000000e+00 : f32
      %17 = vector.broadcast %cst_12 : f32 to vector<8x128xf32>
      %c0_13 = arith.constant 0 : index
      %c0_14 = arith.constant 0 : index
      %c0_15 = arith.constant 0 : index
      %18 = vector.load %arg5[%c0_13, %c0_14, %c0_15] : memref<1x8x128xf32, #tpu.memory_space<vmem>>, vector<1x8x128xf32>
      %19 = vector.shape_cast %18 : vector<1x8x128xf32> to vector<8x128xf32>
      %20 = vector.shape_cast %17 : vector<8x128xf32> to vector<1x8x128xf32>
      tpu.vector_store %arg5[%c0_13, %c0_14, %c0_15], %20 {strides = array<i32>} : memref<1x8x128xf32, #tpu.memory_space<vmem>>, vector<1x8x128xf32>,
    } else {
    }
    %c0 = arith.constant 0 : index
    %c0_1 = arith.constant 0 : index
    %3 = vector.load %arg2[%c0, %c0_1] : memref<16x128xf32, #tpu.memory_space<vmem>>, vector<16x128xf32>
    %c0_2 = arith.constant 0 : index
    %c0_3 = arith.constant 0 : index
    %4 = vector.load %arg3[%c0_2, %c0_3] : memref<16x128xf32, #tpu.memory_space<vmem>>, vector<16x128xf32>
    %5 = arith.subf %3, %4 : vector<16x128xf32>
    %6 = arith.mulf %5, %5 : vector<16x128xf32>
    %c0_4 = arith.constant 0 : index
    %c0_5 = arith.constant 0 : index
    %7 = vector.load %arg4[%c0_4, %c0_5] : memref<16x128xf32, #tpu.memory_space<vmem>>, vector<16x128xf32>
    %8 = arith.mulf %6, %7 : vector<16x128xf32>
    %9 = vector.shape_cast %8 : vector<16x128xf32> to vector<2x8x128xf32>
    %cst = arith.constant dense<0.000000e+00> : vector<8x128xf32>
    %10 = vector.multi_reduction <add>, %9, %cst [0] : vector<2x8x128xf32> to vector<8x128xf32>
    %c0_6 = arith.constant 0 : index
    %c0_7 = arith.constant 0 : index
    %c0_8 = arith.constant 0 : index
    %11 = vector.load %arg5[%c0_6, %c0_7, %c0_8] : memref<1x8x128xf32, #tpu.memory_space<vmem>>, vector<1x8x128xf32>
    %12 = vector.shape_cast %11 : vector<1x8x128xf32> to vector<8x128xf32>
    %13 = arith.addf %12, %10 : vector<8x128xf32>
    %c0_9 = arith.constant 0 : index
    %c0_10 = arith.constant 0 : index
    %c0_11 = arith.constant 0 : index
    %14 = vector.load %arg5[%c0_9, %c0_10, %c0_11] : memref<1x8x128xf32, #tpu.memory_space<vmem>>, vector<1x8x128xf32>
    %15 = vector.shape_cast %14 : vector<1x8x128xf32> to vector<8x128xf32>
    %16 = vector.shape_cast %13 : vector<8x128xf32> to vector<1x8x128xf32>
    tpu.vector_store %arg5[%c0_9, %c0_10, %c0_11], %16 {strides = array<i32>} : memref<1x8x128xf32, #tpu.memory_space<vmem>>, vector<1x8x128xf32>,
    return
  }
  func.func @transform_0(%arg0: i32, %arg1: i32) -> (i32, i32) {
    %c1_i32 = arith.constant 1 : i32
    %0 = arith.muli %arg0, %c1_i32 : i32
    %1 = arith.addi %0, %arg1 : i32
    %c0_i32 = arith.constant 0 : i32
    %c0_i32_0 = arith.constant 0 : i32
    return %1, %c0_i32 : i32, i32
  }
  func.func @transform_1(%arg0: i32, %arg1: i32) -> (i32, i32) {
    %c1_i32 = arith.constant 1 : i32
    %0 = arith.muli %arg0, %c1_i32 : i32
    %1 = arith.addi %0, %arg1 : i32
    %c0_i32 = arith.constant 0 : i32
    %c0_i32_0 = arith.constant 0 : i32
    return %1, %c0_i32 : i32, i32
  }
  func.func @transform_2(%arg0: i32, %arg1: i32) -> (i32, i32) {
    %c1_i32 = arith.constant 1 : i32
    %0 = arith.muli %arg0, %c1_i32 : i32
    %1 = arith.addi %0, %arg1 : i32
    %c0_i32 = arith.constant 0 : i32
    %c0_i32_0 = arith.constant 0 : i32
    return %1, %c0_i32 : i32, i32
  }
  func.func @transform_3(%arg0: i32, %arg1: i32) -> (i32, i32, i32) {
    %c0_i32 = arith.constant 0 : i32
    %c0_i32_0 = arith.constant 0 : i32
    %c0_i32_1 = arith.constant 0 : i32
    return %arg0, %c0_i32, %c0_i32_0 : i32, i32, i32
  }
}

</mosaic_0001>

<llo_original>
// kernel: tpu_custom_call.1
$region0: #{tpu_custom_call.1}
  #allocation0 [shape = 'u32[]', space=smem, size = 0x4, offset = 0x4, fixed_abs, tag = 'smem constant byte address 0x4 - core index']
  #allocation1 [shape = 'u32[72,128]{1,0:T(1,128)}', space=vmem, size = 0x9000, scoped, tag = 'internal scratch']
  %s0 = inlined_call_operand.hbm [shape: f32[16,128], index: 0, kind: input, shape index: {}]
  %s1 = inlined_call_operand.hbm [shape: f32[16,128], index: 1, kind: input, shape index: {}]
  %s2 = inlined_call_operand.hbm [shape: f32[16,128], index: 2, kind: input, shape index: {}]
  %s3 = inlined_call_operand.hbm [shape: f32[1,8,128], index: 3, kind: output, shape index: {}]
  %s4 = sld [smem:[#allocation0]]
  $region38: #{tpu_custom_call.1} parent=0
    _
  %s6 = ssub.s32 1, %s4
  %s7 = scalar_select 0, %s6, %s4
  $region1: #{tpu_custom_call.1} parent=0
    #allocation2 [shape = 'u8[8192]{0}', space=vmem, size = 0x2000, scoped, tag = 'input window, operand 0, single buffered']
    #allocation3 [shape = 's32[1]{0}', space=sflag, size = 0x4, scoped, tag = 'scoped memory for tpu_custom_call.1']
    #allocation4 [shape = 's32[1]{0}', space=sflag, size = 0x4, scoped, tag = 'scoped memory for tpu_custom_call.1']
    #allocation5 [shape = 'u8[8192]{0}', space=vmem, size = 0x2000, scoped, tag = 'input window, operand 1, single buffered']
    #allocation6 [shape = 's32[1]{0}', space=sflag, size = 0x4, scoped, tag = 'scoped memory for tpu_custom_call.1']
    #allocation7 [shape = 'u8[8192]{0}', space=vmem, size = 0x2000, scoped, tag = 'input window, operand 2, single buffered']
    #allocation8 [shape = 'u8[4096]{0}', space=vmem, size = 0x1000, scoped, tag = 'output window, operand 0, single buffered']
    %8 = vsyncpa [#allocation3], 0
    %9 = vsyncpa [#allocation6], 0
    %10 = vsyncpa [#allocation4], 0
    // Predicated region
    $region2: #{tpu_custom_call.1} parent=1 // pred_check
      _
    $region3: #{tpu_custom_call.1} parent=1 // pred_check_branch
      %12 = sbr.rel (0) target = $region5
    $region4: #{tpu_custom_call.1} parent=1 // pred_region
      %s13 = sadd.s32 0, 0
      %s14 = smul.u32 2, %s13
      %16 = vsyncadd [#allocation3], 0
      %s17 = smul.addr %s14, 8
      %s18 = scalar_lea.hbm %s0, %s17
      %s19 = sshll.u32 %s18, 4
      %s20 = int_to_ptr.hbm [resolvable:$true] %s19
      %s21 = sshll.u32 [#allocation2], 4
      %s22 = int_to_ptr.vmem [resolvable:$true] %s21
      %27 = dma.hbm_to_vmem [thread:$0]  %s20, 256, %s22, [#allocation3], 128, 128, 8
    $region5: #{tpu_custom_call.1} parent=1 // pred_fallthru
      _
    // Predicated region
    $region6: #{tpu_custom_call.1} parent=1 // pred_check
      _
    $region7: #{tpu_custom_call.1} parent=1 // pred_check_branch
      %29 = sbr.rel (0) target = $region9
    $region8: #{tpu_custom_call.1} parent=1 // pred_region
      %s30 = sadd.s32 0, 0
      %s31 = smul.u32 2, %s30
      %33 = vsyncadd [#allocation6], 0
      %s34 = smul.addr %s31, 8
      %s35 = scalar_lea.hbm %s1, %s34
      %s36 = sshll.u32 %s35, 4
      %s37 = int_to_ptr.hbm [resolvable:$true] %s36
      %s38 = sshll.u32 [#allocation5], 4
      %s39 = int_to_ptr.vmem [resolvable:$true] %s38
      %44 = dma.hbm_to_vmem [thread:$0]  %s37, 256, %s39, [#allocation6], 128, 128, 8
    $region9: #{tpu_custom_call.1} parent=1 // pred_fallthru
      _
    // Predicated region
    $region10: #{tpu_custom_call.1} parent=1 // pred_check
      _
    $region11: #{tpu_custom_call.1} parent=1 // pred_check_branch
      %46 = sbr.rel (0) target = $region13
    $region12: #{tpu_custom_call.1} parent=1 // pred_region
      %s47 = sadd.s32 0, 0
      %s48 = smul.u32 2, %s47
      %50 = vsyncadd [#allocation6], 0
      %s51 = smul.addr %s48, 8
      %s52 = scalar_lea.hbm %s2, %s51
      %s53 = sshll.u32 %s52, 4
      %s54 = int_to_ptr.hbm [resolvable:$true] %s53
      %s55 = sshll.u32 [#allocation7], 4
      %s56 = int_to_ptr.vmem [resolvable:$true] %s55
      %61 = dma.hbm_to_vmem [thread:$0]  %s54, 256, %s56, [#allocation6], 128, 128, 8
    $region13: #{tpu_custom_call.1} parent=1 // pred_fallthru
      _
    // Predicated region
    $region14: #{tpu_custom_call.1} parent=1 // pred_check
      _
    $region15: #{tpu_custom_call.1} parent=1 // pred_check_branch
      %63 = sbr.rel (0) target = $region17
    $region16: #{tpu_custom_call.1} parent=1 // pred_region
      %65 = dma.done [#allocation3], 256
    $region17: #{tpu_custom_call.1} parent=1 // pred_fallthru
      _
    // Predicated region
    $region18: #{tpu_custom_call.1} parent=1 // pred_check
      _
    $region19: #{tpu_custom_call.1} parent=1 // pred_check_branch
      %67 = sbr.rel (0) target = $region21
    $region20: #{tpu_custom_call.1} parent=1 // pred_region
      %69 = dma.done [#allocation6], 256
    $region21: #{tpu_custom_call.1} parent=1 // pred_fallthru
      _
    // Predicated region
    $region22: #{tpu_custom_call.1} parent=1 // pred_check
      _
    $region23: #{tpu_custom_call.1} parent=1 // pred_check_branch
      %71 = sbr.rel (0) target = $region25
    $region24: #{tpu_custom_call.1} parent=1 // pred_region
      %73 = dma.done [#allocation6], 256
    $region25: #{tpu_custom_call.1} parent=1 // pred_fallthru
      _
    %s74 = sadd.s32 0, 0
    %s75 = smul.u32 2, %s74
    %s76 = sadd.s32 0, 0
    %s77 = smul.u32 2, %s76
    %s78 = sadd.s32 0, 0
    %s79 = smul.u32 2, %s78
    %p80 = scmp.eq.s32.totalorder 0, 0
    // Predicated region
    $region26: #{tpu_custom_call.1} parent=1 // pred_check
      %p81 = pneg %p80
    $region27: #{tpu_custom_call.1} parent=1 // pred_check_branch
      %83 = sbr.rel (%p81) target = $region29
    $region28: #{tpu_custom_call.1} parent=1 // pred_region
      %84 = vst [vmem:[#allocation8] sm:$0xff] 0.0
    $region29: #{tpu_custom_call.1} parent=1 // pred_fallthru
      _
    %v85 = vld [vmem:[#allocation2] sm:$0xff]
    %v86 = vld [vmem:[#allocation2 + $0x8] sm:$0xff]
    %v87 = vld [vmem:[#allocation5] sm:$0xff]
    %v88 = vld [vmem:[#allocation5 + $0x8] sm:$0xff]
    %v89 = vsub.f32 %v85, %v87
    %v90 = vsub.f32 %v86, %v88
    %v91 = vmul.f32 %v89, %v89
    %v92 = vmul.f32 %v90, %v90
    %v93 = vld [vmem:[#allocation7] sm:$0xff]
    %v94 = vld [vmem:[#allocation7 + $0x8] sm:$0xff]
    %v95 = vmul.f32 %v91, %v93
    %v96 = vmul.f32 %v92, %v94
    %v97 = vadd.f32 %v95, %v96
    %v98 = vld [vmem:[#allocation8] sm:$0xff]
    %v99 = vadd.f32 %v98, %v97
    %100 = vst [vmem:[#allocation8] sm:$0xff] %v99
    // Predicated region
    $region30: #{tpu_custom_call.1} parent=1 // pred_check
      _
    $region31: #{tpu_custom_call.1} parent=1 // pred_check_branch
      %102 = sbr.rel (0) target = $region33
    $region32: #{tpu_custom_call.1} parent=1 // pred_region
      %104 = vsyncadd [#allocation4], 0
      %s106 = sshll.u32 [#allocation8], 4
      %s107 = int_to_ptr.vmem [resolvable:$true] %s106
      %s108 = sshll.u32 %s3, 4
      %s109 = int_to_ptr.hbm [resolvable:$true] %s108
      %111 = dma.vmem_to_hbm [thread:$0]  %s107, 128, %s109, [#allocation4]
    $region33: #{tpu_custom_call.1} parent=1 // pred_fallthru
      _
    // Predicated region
    $region34: #{tpu_custom_call.1} parent=1 // pred_check
      _
    $region35: #{tpu_custom_call.1} parent=1 // pred_check_branch
      %113 = sbr.rel (0) target = $region37
    $region36: #{tpu_custom_call.1} parent=1 // pred_region
      %115 = dma.done [#allocation4], 128
    $region37: #{tpu_custom_call.1} parent=1 // pred_fallthru
      _
    %116 = vsyncpa [#allocation3], 1
    %117 = vsyncpa [#allocation6], 1
    %118 = vsyncpa [#allocation4], 1

</llo_original>
